<compile_context>
chip_gen: v7x
topology: tpu7x:2x2x1
jax: 0.10.0
libtpu: 0.0.40
codegen_flags: <defaults>
</compile_context>

<pallas_src>
import jax
import jax.numpy as jnp
from jax import lax
from jax.experimental import pallas as pl
from jax.experimental.pallas import tpu as pltpu

_LANE = 128
_CHUNK = 512  # inner lane-chunk: (hidden, 512) f32 intermediate ~= 16 vregs


def _round_up(x, m):
    return (x + m - 1) // m * m


def _make_valuenet_kernel(n_chunks, chunk):
    """Kernel over one (tm, d_in) row tile; tm == n_chunks * chunk."""

    def kernel(x_ref, w1t_ref, b1_ref, w2t_ref, b2_ref, w3_ref, b3_ref, v_ref):
        # x_ref : (tm, d_in)            row tile (rows on sublanes)
        # w1t   : (H, d_in)   b1: (H, 1)
        # w2t   : (H, H)      b2: (H, 1)
        # w3    : (H, 1)      b3: (1, 1) scalar in SMEM
        # v_ref : (1, tm)               lane-dense output row

        def process(off):
            xc = x_ref[pl.ds(off, chunk), :]                       # (chunk, d_in)

            # fc1: h1^T = W1^T @ xc^T (NT matmul, contraction on the feature
            # axis of both operands) -> (H, chunk); rows land on lanes.
            # TODO(synk): confirm with pl.lower_as_mlir that this NT dot does
            #             not materialize a relayout of the xc slab in VMEM.
            h1 = lax.dot_general(
                w1t_ref[...], xc,
                dimension_numbers=(((1,), (1,)), ((), ())),
                preferred_element_type=jnp.float32,
            ) + b1_ref[...]
            h1 = jnp.maximum(h1, 0.0)                              # ReLU (f32)

            # fc2: h2^T = W2^T @ h1^T -> (H, chunk); cast keeps bf16 path on
            # the MXU when compute_dtype=bf16 (no-op in f32 mode).
            h2 = jnp.dot(
                w2t_ref[...], h1.astype(w2t_ref.dtype),
                preferred_element_type=jnp.float32,
            ) + b2_ref[...]
            h2 = jnp.maximum(h2, 0.0)                              # ReLU (f32)

            # fc3 (single unit): VPU multiply + sublane reduce -> (1, chunk),
            # lane-dense (no N=1 MXU matmul, no masked 1-lane stores).
            v = jnp.sum(h2 * w3_ref[...], axis=0, keepdims=True) + b3_ref[0, 0]
            v_ref[:, pl.ds(off, chunk)] = v.astype(v_ref.dtype)

        if n_chunks == 1:
            process(0)
        else:
            def body(c, carry):
                process(pl.multiple_of(c * chunk, chunk))
                return carry
            lax.fori_loop(0, n_chunks, body, 0)

    return kernel


def _pick_row_tile(n_rows, tile_m):
    """Row tile: multiple of 128, as large as possible (amortizes ~0.35 us of
    per-grid-step overhead and small DMAs), but
      (a) capped so the double-buffered, lane-padded x block (tm*128*4 B per
          buffer) stays well inside v5e's 16 MiB default scoped VMEM
          (v6e/v7x fit trivially), and
      (b) shrunk only as far as needed to keep >= 2 grid steps when there is
          enough work (pipelining overlap everywhere + both v7x TensorCores);
          no forced 4-way split on single-TC chips.
    """
    full = _round_up(max(n_rows, 1), _LANE)
    if full <= _CHUNK:
        return full                                    # one small tile
    vmem_cap_rows = (12 << 20) // (2 * _LANE * 4)      # 12288 rows
    cap = max(_CHUNK, (min(int(tile_m), vmem_cap_rows) // _CHUNK) * _CHUNK)
    two_step = _round_up(pl.cdiv(n_rows, 2), _CHUNK)
    return min(cap, max(_CHUNK, two_step))


def valuenet_forward(inputs, params, *, tile_m=8192, compute_dtype=jnp.float32):
    """inputs: (bs, max_t, n_agents, input_shape) float32.
    params: dict with w1(D,H) b1(H,) w2(H,H) b2(H,) w3(H,1) b3(1,).
    returns: (bs, max_t, n_agents, 1) float32.

    compute_dtype=jnp.bfloat16 halves the dominant x HBM read (f32 MXU
    accumulation is kept); it loosens agreement with the f32 reference.
    """
    bs, max_t, n_agents, d_in = inputs.shape
    n_rows = bs * max_t * n_agents
    x = inputs.reshape(n_rows, d_in).astype(compute_dtype)   # no padding copy

    hidden = params["w1"].shape[1]

    tm = _pick_row_tile(n_rows, tile_m)
    chunk = min(_CHUNK, tm)
    n_chunks = tm // chunk
    grid = (pl.cdiv(n_rows, tm),)     # ragged last block handled by Pallas

    # Pre-transposed / reshaped parameters (tiny; done once outside the kernel).
    w1t = jnp.asarray(params["w1"]).astype(compute_dtype).T       # (H, D_in)
    w2t = jnp.asarray(params["w2"]).astype(compute_dtype).T       # (H, H)
    b1c = jnp.asarray(params["b1"], jnp.float32).reshape(-1, 1)   # (H, 1)
    b2c = jnp.asarray(params["b2"], jnp.float32).reshape(-1, 1)   # (H, 1)
    w3c = jnp.asarray(params["w3"], jnp.float32).reshape(-1, 1)   # (H, 1)
    b3s = jnp.asarray(params["b3"], jnp.float32).reshape(1, 1)    # SMEM scalar

    # TODO(synk): weight/bias blocks have constant index maps; single-buffer
    #             them (pipeline_mode=pl.Buffered(1)) once that mode is
    #             confirmed to compile on all target jax/libtpu versions.
    out = pl.pallas_call(
        _make_valuenet_kernel(n_chunks, chunk),
        out_shape=jax.ShapeDtypeStruct((1, n_rows), jnp.float32),
        grid_spec=pltpu.PrefetchScalarGridSpec(
            num_scalar_prefetch=0,
            grid=grid,
            in_specs=[
                pl.BlockSpec((tm, d_in), lambda i: (i, 0)),          # x tile
                pl.BlockSpec((hidden, d_in), lambda i: (0, 0)),      # W1^T
                pl.BlockSpec((hidden, 1), lambda i: (0, 0)),         # b1
                pl.BlockSpec((hidden, hidden), lambda i: (0, 0)),    # W2^T
                pl.BlockSpec((hidden, 1), lambda i: (0, 0)),         # b2
                pl.BlockSpec((hidden, 1), lambda i: (0, 0)),         # w3
                pl.BlockSpec(memory_space=pltpu.MemorySpace.SMEM),   # b3 scalar
            ],
            out_specs=pl.BlockSpec((1, tm), lambda i: (0, i)),       # lane-dense
        ),
        compiler_params=pltpu.CompilerParams(
            dimension_semantics=("parallel",)),
    )(x, w1t, b1c, w2t, b2c, w3c, b3s)

    return out.reshape(bs, max_t, n_agents, 1)


def init_params(key, d_in, hidden):
    """Deterministic init mimicking torch.nn.Linear defaults:
    U(-1/sqrt(fan_in), 1/sqrt(fan_in)). Weights stored as (in, out)
    (PyTorch stores (out, in) and computes x @ W^T; pre-transposed here)."""
    k1, k2, k3, k4, k5, k6 = jax.random.split(key, 6)
    s1 = 1.0 / jnp.sqrt(d_in)
    s2 = 1.0 / jnp.sqrt(hidden)
    return {
        "w1": jax.random.uniform(k1, (d_in, hidden), jnp.float32, -s1, s1),
        "b1": jax.random.uniform(k2, (hidden,), jnp.float32, -s1, s1),
        "w2": jax.random.uniform(k3, (hidden, hidden), jnp.float32, -s2, s2),
        "b2": jax.random.uniform(k4, (hidden,), jnp.float32, -s2, s2),
        "w3": jax.random.uniform(k5, (hidden, 1), jnp.float32, -s2, s2),
        "b3": jax.random.uniform(k6, (1,), jnp.float32, -s2, s2),
    }


def reference_forward(inputs, params):
    x = inputs @ params["w1"] + params["b1"]
    x = jnp.maximum(x, 0.0)
    x = jnp.maximum(x @ params["w2"] + params["b2"], 0.0)
    return x @ params["w3"] + params["b3"]


if __name__ == "__main__":
    # Shapes consistent with the module's _build_inputs:
    #   obs vshape = 12, n_agents = 4 -> input_shape = 12 + 4 = 16
    #   rnn_hidden_dim = 32
    obs_dim, n_agents, hidden = 12, 4, 32
    d_in = obs_dim + n_agents

    key = jax.random.PRNGKey(0)
    k_in, k_in2, k_p = jax.random.split(key, 3)
    params = init_params(k_p, d_in, hidden)

    # 1) Small shape (64 rows -> single 128-row tile, ragged, masked store).
    bs, max_t = 2, 8
    inputs = jax.random.normal(k_in, (bs, max_t, n_agents, d_in), jnp.float32)
    v = jax.block_until_ready(valuenet_forward(inputs, params))
    v_ref = reference_forward(inputs, params)
    assert v.shape == (bs, max_t, n_agents, 1)
    assert jnp.allclose(v, v_ref, atol=1e-4, rtol=1e-4), "f32 mismatch (small)"

    # 2) Larger shape (2176 rows -> tm=1536, 2 grid steps, 3-chunk inner loop,
    #    ragged last block) to exercise the multi-step / chunked / edge paths.
    bs2, max_t2 = 16, 34
    inputs2 = jax.random.normal(k_in2, (bs2, max_t2, n_agents, d_in),
                                jnp.float32)
    v2 = jax.block_until_ready(valuenet_forward(inputs2, params))
    v2_ref = reference_forward(inputs2, params)
    assert jnp.allclose(v2, v2_ref, atol=1e-4, rtol=1e-4), "f32 mismatch (big)"

    # 3) Optional bf16 fast path (halves the x HBM stream; looser tolerance).
    v2_bf16 = jax.block_until_ready(
        valuenet_forward(inputs2, params, compute_dtype=jnp.bfloat16))
    assert jnp.allclose(v2_bf16, v2_ref, atol=5e-2, rtol=5e-2), "bf16 mismatch"

    print("KERNEL_OK")
</pallas_src>

<mosaic_0001>
module attributes {stable_mosaic.version = 11 : i64} {
  func.func @kernel(%arg0: i32, %arg1: memref<128x16xf32, #tpu.memory_space<vmem>>, %arg2: memref<32x16xf32, #tpu.memory_space<vmem>>, %arg3: memref<32x1xf32, #tpu.memory_space<vmem>>, %arg4: memref<32x32xf32, #tpu.memory_space<vmem>>, %arg5: memref<32x1xf32, #tpu.memory_space<vmem>>, %arg6: memref<32x1xf32, #tpu.memory_space<vmem>>, %arg7: memref<1x1xf32, #tpu.memory_space<smem>>, %arg8: memref<1x128xf32, #tpu.memory_space<vmem>>) attributes {dimension_semantics = [#tpu.dimension_semantics<parallel>], iteration_bounds = array<i64: 1>, scalar_prefetch = 0 : i64, scratch_operands = 0 : i64, tpu.core_type = #tpu.core_type<tc>, window_params = [{transform_indices = @transform_0, window_bounds = array<i64: 128, 16>}, {pipeline_mode = #tpu.pipeline_mode<synchronous>, transform_indices = @transform_1, window_bounds = array<i64: 32, 16>}, {pipeline_mode = #tpu.pipeline_mode<synchronous>, transform_indices = @transform_2, window_bounds = array<i64: 32, 1>}, {pipeline_mode = #tpu.pipeline_mode<synchronous>, transform_indices = @transform_3, window_bounds = array<i64: 32, 32>}, {pipeline_mode = #tpu.pipeline_mode<synchronous>, transform_indices = @transform_4, window_bounds = array<i64: 32, 1>}, {pipeline_mode = #tpu.pipeline_mode<synchronous>, transform_indices = @transform_5, window_bounds = array<i64: 32, 1>}, {transform_indices = @transform_6, window_bounds = array<i64: 1, 1>}, {transform_indices = @transform_7, window_bounds = array<i64: 1, 128>}]} {
    %c0 = arith.constant 0 : index
    %c0_0 = arith.constant 0 : index
    %0 = vector.load %arg1[%c0, %c0_0] : memref<128x16xf32, #tpu.memory_space<vmem>>, vector<128x16xf32>
    %c0_1 = arith.constant 0 : index
    %c0_2 = arith.constant 0 : index
    %1 = vector.load %arg2[%c0_1, %c0_2] : memref<32x16xf32, #tpu.memory_space<vmem>>, vector<32x16xf32>
    %cst = arith.constant dense<0.000000e+00> : vector<32x128xf32>
    %2 = tpu.matmul %1, %0, %cst {dimension_numbers = #tpu.dot_dimension_numbers<[1], [1], [0], [0], [0, 0, 1, 0], [], []>} : vector<32x16xf32>, vector<128x16xf32>, vector<32x128xf32> -> vector<32x128xf32>
    %c0_3 = arith.constant 0 : index
    %c0_4 = arith.constant 0 : index
    %3 = vector.load %arg3[%c0_3, %c0_4] : memref<32x1xf32, #tpu.memory_space<vmem>>, vector<32x1xf32>
    %4 = vector.broadcast %3 : vector<32x1xf32> to vector<32x128xf32>
    %5 = arith.addf %2, %4 : vector<32x128xf32>
    %cst_5 = arith.constant 0.000000e+00 : f32
    %6 = vector.broadcast %cst_5 : f32 to vector<32x128xf32>
    %7 = arith.maximumf %5, %6 : vector<32x128xf32>
    %c0_6 = arith.constant 0 : index
    %c0_7 = arith.constant 0 : index
    %8 = vector.load %arg4[%c0_6, %c0_7] : memref<32x32xf32, #tpu.memory_space<vmem>>, vector<32x32xf32>
    %cst_8 = arith.constant dense<0.000000e+00> : vector<32x128xf32>
    %9 = tpu.matmul %8, %7, %cst_8 {dimension_numbers = #tpu.dot_dimension_numbers<[1], [0], [0], [1], [0, 0, 1, 1], [], []>} : vector<32x32xf32>, vector<32x128xf32>, vector<32x128xf32> -> vector<32x128xf32>
    %c0_9 = arith.constant 0 : index
    %c0_10 = arith.constant 0 : index
    %10 = vector.load %arg5[%c0_9, %c0_10] : memref<32x1xf32, #tpu.memory_space<vmem>>, vector<32x1xf32>
    %11 = vector.broadcast %10 : vector<32x1xf32> to vector<32x128xf32>
    %12 = arith.addf %9, %11 : vector<32x128xf32>
    %cst_11 = arith.constant 0.000000e+00 : f32
    %13 = vector.broadcast %cst_11 : f32 to vector<32x128xf32>
    %14 = arith.maximumf %12, %13 : vector<32x128xf32>
    %c0_12 = arith.constant 0 : index
    %c0_13 = arith.constant 0 : index
    %15 = vector.load %arg6[%c0_12, %c0_13] : memref<32x1xf32, #tpu.memory_space<vmem>>, vector<32x1xf32>
    %16 = vector.broadcast %15 : vector<32x1xf32> to vector<32x128xf32>
    %17 = arith.mulf %14, %16 : vector<32x128xf32>
    %cst_14 = arith.constant dense<0.000000e+00> : vector<128xf32>
    %18 = vector.multi_reduction <add>, %17, %cst_14 [0] : vector<32x128xf32> to vector<128xf32>
    %19 = vector.shape_cast %18 : vector<128xf32> to vector<1x128xf32>
    %c0_15 = arith.constant 0 : index
    %c0_16 = arith.constant 0 : index
    %20 = memref.load %arg7[%c0_15, %c0_16] : memref<1x1xf32, #tpu.memory_space<smem>>
    %21 = vector.broadcast %20 : f32 to vector<1x128xf32>
    %22 = arith.addf %19, %21 : vector<1x128xf32>
    %c0_17 = arith.constant 0 : index
    %c0_18 = arith.constant 0 : index
    %23 = vector.load %arg8[%c0_17, %c0_18] : memref<1x128xf32, #tpu.memory_space<vmem>>, vector<1x128xf32>
    tpu.vector_store %arg8[%c0_17, %c0_18], %22 {strides = array<i32>} : memref<1x128xf32, #tpu.memory_space<vmem>>, vector<1x128xf32>,
    return
  }
  func.func @transform_0(%arg0: i32) -> (i32, i32) {
    %c0_i32 = arith.constant 0 : i32
    %c0_i32_0 = arith.constant 0 : i32
    return %arg0, %c0_i32 : i32, i32
  }
  func.func @transform_1(%arg0: i32) -> (i32, i32) {
    %c0_i32 = arith.constant 0 : i32
    %c0_i32_0 = arith.constant 0 : i32
    %c0_i32_1 = arith.constant 0 : i32
    return %c0_i32, %c0_i32_0 : i32, i32
  }
  func.func @transform_2(%arg0: i32) -> (i32, i32) {
    %c0_i32 = arith.constant 0 : i32
    %c0_i32_0 = arith.constant 0 : i32
    %c0_i32_1 = arith.constant 0 : i32
    return %c0_i32, %c0_i32_0 : i32, i32
  }
  func.func @transform_3(%arg0: i32) -> (i32, i32) {
    %c0_i32 = arith.constant 0 : i32
    %c0_i32_0 = arith.constant 0 : i32
    %c0_i32_1 = arith.constant 0 : i32
    return %c0_i32, %c0_i32_0 : i32, i32
  }
  func.func @transform_4(%arg0: i32) -> (i32, i32) {
    %c0_i32 = arith.constant 0 : i32
    %c0_i32_0 = arith.constant 0 : i32
    %c0_i32_1 = arith.constant 0 : i32
    return %c0_i32, %c0_i32_0 : i32, i32
  }
  func.func @transform_5(%arg0: i32) -> (i32, i32) {
    %c0_i32 = arith.constant 0 : i32
    %c0_i32_0 = arith.constant 0 : i32
    %c0_i32_1 = arith.constant 0 : i32
    return %c0_i32, %c0_i32_0 : i32, i32
  }
  func.func @transform_6(%arg0: i32) -> (i32, i32) {
    %c0_i32 = arith.constant 0 : i32
    %c0_i32_0 = arith.constant 0 : i32
    %c0_i32_1 = arith.constant 0 : i32
    return %c0_i32, %c0_i32_0 : i32, i32
  }
  func.func @transform_7(%arg0: i32) -> (i32, i32) {
    %c0_i32 = arith.constant 0 : i32
    %c0_i32_0 = arith.constant 0 : i32
    return %c0_i32, %arg0 : i32, i32
  }
}

</mosaic_0001>

<llo_original>
// kernel: tpu_custom_call.1
$region0: #{tpu_custom_call.1}
  #allocation0 [shape = 'u32[]', space=smem, size = 0x4, offset = 0x4, fixed_abs, tag = 'smem constant byte address 0x4 - core index']
  #allocation1 [shape = 'u32[144,128]{1,0:T(1,128)}', space=vmem, size = 0x12000, scoped, tag = 'internal scratch']
  #allocation2 [shape = 'f32[1,1]{1,0:T(1,128)S(6)}', space=smem, size = 0x200, scoped, tag = 'scoped memory for tpu_custom_call.1']
  %s0 = inlined_call_operand.vmem [shape: f32[64,16], index: 0, kind: input, shape index: {}]
  %s1 = inlined_call_operand.vmem [shape: f32[32,16], index: 1, kind: input, shape index: {}]
  %s2 = inlined_call_operand.vmem [shape: f32[32,1], index: 2, kind: input, shape index: {}]
  %s3 = inlined_call_operand.vmem [shape: f32[32,32], index: 3, kind: input, shape index: {}]
  %s4 = inlined_call_operand.vmem [shape: f32[32,1], index: 4, kind: input, shape index: {}]
  %s5 = inlined_call_operand.vmem [shape: f32[32,1], index: 5, kind: input, shape index: {}]
  %s6 = inlined_call_operand.<no memory space> [shape: f32[1,1], index: 6, kind: input, shape index: {}]
  %s7 = inlined_call_operand.hbm [shape: f32[1,64], index: 7, kind: output, shape index: {}]
  %s8 = sld [smem:[#allocation0]]
  $region38: #{tpu_custom_call.1} parent=0
    _
  %s10 = ssub.s32 1, %s8
  %s11 = scalar_select 0, %s10, %s8
  %12 = sst [smem:[#allocation2]] %s6
  $region1: #{tpu_custom_call.1} parent=0
    #allocation3 [shape = 'u8[512]{0}', space=vmem, size = 0x400, scoped, tag = 'output window, operand 0, single buffered']
    #allocation4 [shape = 's32[1]{0}', space=sflag, size = 0x4, scoped, tag = 'scoped memory for tpu_custom_call.1']
    %13 = vsyncpa [#allocation4], 0
    // Predicated region
    $region2: #{tpu_custom_call.1} parent=1 // pred_check
      _
    $region3: #{tpu_custom_call.1} parent=1 // pred_check_branch
      %15 = sbr.rel (0) target = $region5
    $region4: #{tpu_custom_call.1} parent=1 // pred_region
      _
    $region5: #{tpu_custom_call.1} parent=1 // pred_fallthru
      _
    // Predicated region
    $region6: #{tpu_custom_call.1} parent=1 // pred_check
      _
    $region7: #{tpu_custom_call.1} parent=1 // pred_check_branch
      %17 = sbr.rel (0) target = $region9
    $region8: #{tpu_custom_call.1} parent=1 // pred_region
      _
    $region9: #{tpu_custom_call.1} parent=1 // pred_fallthru
      _
    // Predicated region
    $region10: #{tpu_custom_call.1} parent=1 // pred_check
      _
    $region11: #{tpu_custom_call.1} parent=1 // pred_check_branch
      %19 = sbr.rel (0) target = $region13
    $region12: #{tpu_custom_call.1} parent=1 // pred_region
      _
    $region13: #{tpu_custom_call.1} parent=1 // pred_fallthru
      _
    // Predicated region
    $region14: #{tpu_custom_call.1} parent=1 // pred_check
      _
    $region15: #{tpu_custom_call.1} parent=1 // pred_check_branch
      %21 = sbr.rel (0) target = $region17
    $region16: #{tpu_custom_call.1} parent=1 // pred_region
      _
    $region17: #{tpu_custom_call.1} parent=1 // pred_fallthru
      _
    // Predicated region
    $region18: #{tpu_custom_call.1} parent=1 // pred_check
      _
    $region19: #{tpu_custom_call.1} parent=1 // pred_check_branch
      %23 = sbr.rel (0) target = $region21
    $region20: #{tpu_custom_call.1} parent=1 // pred_region
      _
    $region21: #{tpu_custom_call.1} parent=1 // pred_fallthru
      _
    // Predicated region
    $region22: #{tpu_custom_call.1} parent=1 // pred_check
      _
    $region23: #{tpu_custom_call.1} parent=1 // pred_check_branch
      %25 = sbr.rel (0) target = $region25
    $region24: #{tpu_custom_call.1} parent=1 // pred_region
      _
    $region25: #{tpu_custom_call.1} parent=1 // pred_fallthru
      _
    // Predicated region
    $region26: #{tpu_custom_call.1} parent=1 // pred_check
      _
    $region27: #{tpu_custom_call.1} parent=1 // pred_check_branch
      %27 = sbr.rel (0) target = $region29
    $region28: #{tpu_custom_call.1} parent=1 // pred_region
      _
    $region29: #{tpu_custom_call.1} parent=1 // pred_fallthru
      _
    %v28 = vld [vmem:[%s0] sm:$0xff]
    %v29 = vld [vmem:[%s0 + $0x8] sm:$0xff]
    %v30 = vld [vmem:[%s0 + $0x10] sm:$0xff]
    %v31 = vld [vmem:[%s0 + $0x18] sm:$0xff]
    %v32 = vld [vmem:[%s0 + $0x20] sm:$0xff]
    %v33 = vld [vmem:[%s0 + $0x28] sm:$0xff]
    %v34 = vld [vmem:[%s0 + $0x30] sm:$0xff]
    %v35 = vld [vmem:[%s0 + $0x38] sm:$0xff]
    %v36 = vld [vmem:[%s0 + $0x40] sm:$0xff]
    %v37 = vld [vmem:[%s0 + $0x48] sm:$0xff]
    %v38 = vld [vmem:[%s0 + $0x50] sm:$0xff]
    %v39 = vld [vmem:[%s0 + $0x58] sm:$0xff]
    %v40 = vld [vmem:[%s0 + $0x60] sm:$0xff]
    %v41 = vld [vmem:[%s0 + $0x68] sm:$0xff]
    %v42 = vld [vmem:[%s0 + $0x70] sm:$0xff]
    %v43 = vld [vmem:[%s0 + $0x78] sm:$0xff]
    %v44 = vld [vmem:[%s1] sm:$0xff]
    %v45 = vld [vmem:[%s1 + $0x8] sm:$0xff]
    %v46 = vld [vmem:[%s1 + $0x10] sm:$0xff]
    %v47 = vld [vmem:[%s1 + $0x18] sm:$0xff]
    %v48 = vld [vmem:[%s2] sm:$0xff]
    %v49 = vld [vmem:[%s2 + $0x8] sm:$0xff]
    %v50 = vld [vmem:[%s2 + $0x10] sm:$0xff]
    %v51 = vld [vmem:[%s2 + $0x18] sm:$0xff]
    %53 = vset.pattern.permute.xlu0 0
    %54 = vperm.xlu0 %53, %v48
    %v55 = vpop.permute.xlu0 %54
    %58 = vset.pattern.permute.xlu0 0
    %59 = vperm.xlu0 %58, %v49
    %v60 = vpop.permute.xlu0 %59
    %63 = vset.pattern.permute.xlu0 0
    %64 = vperm.xlu0 %63, %v50
    %v65 = vpop.permute.xlu0 %64
    %68 = vset.pattern.permute.xlu0 0
    %69 = vperm.xlu0 %68, %v51
    %v70 = vpop.permute.xlu0 %69
    %vm72 = vcmask 130048
    %v74 = vsel %vm72, %v44, 0
    %v77 = vsel %vm72, %v45, 0
    %v80 = vsel %vm72, %v46, 0
    %v83 = vsel %vm72, %v47, 0
    %v86 = vsel %vm72, %v28, 0
    %v89 = vsel %vm72, %v29, 0
    %v92 = vsel %vm72, %v30, 0
    %v95 = vsel %vm72, %v31, 0
    %v98 = vsel %vm72, %v32, 0
    %v101 = vsel %vm72, %v33, 0
    %v104 = vsel %vm72, %v34, 0
    %v107 = vsel %vm72, %v35, 0
    %v110 = vsel %vm72, %v36, 0
    %v113 = vsel %vm72, %v37, 0
    %v116 = vsel %vm72, %v38, 0
    %v119 = vsel %vm72, %v39, 0
    %v122 = vsel %vm72, %v40, 0
    %v125 = vsel %vm72, %v41, 0
    %v128 = vsel %vm72, %v42, 0
    %v131 = vsel %vm72, %v43, 0
    %133 = vmatprep.subr.mxu0 0.0
    %134 = vmatpush1.xpose.msra.mxu0 %v86
    %135 = vmatprep.subr.mxu0 0.0
    %136 = vmatpush1.xpose.msra.mxu0 %v89
    %137 = vmatprep.subr.mxu0 0.0
    %138 = vmatpush1.xpose.msra.mxu0 %v92
    %139 = vmatprep.subr.mxu0 0.0
    %140 = vmatpush1.xpose.msra.mxu0 %v95
    %141 = vmatprep.subr.mxu0 0.0
    %142 = vmatpush1.xpose.msra.mxu0 %v98
    %143 = vmatprep.subr.mxu0 0.0
    %144 = vmatpush1.xpose.msra.mxu0 %v101
    %145 = vmatprep.subr.mxu0 0.0
    %146 = vmatpush1.xpose.msra.mxu0 %v104
    %147 = vmatprep.subr.mxu0 0.0
    %148 = vmatpush1.xpose.msra.mxu0 %v107
    %149 = vmatprep.subr.mxu0 0.0
    %150 = vmatpush1.xpose.msra.mxu0 %v110
    %151 = vmatprep.subr.mxu0 0.0
    %152 = vmatpush1.xpose.msra.mxu0 %v113
    %153 = vmatprep.subr.mxu0 0.0
    %154 = vmatpush1.xpose.msra.mxu0 %v116
    %155 = vmatprep.subr.mxu0 0.0
    %156 = vmatpush1.xpose.msra.mxu0 %v119
    %157 = vmatprep.subr.mxu0 0.0
    %158 = vmatpush1.xpose.msra.mxu0 %v122
    %159 = vmatprep.subr.mxu0 0.0
    %160 = vmatpush1.xpose.msra.mxu0 %v125
    %161 = vmatprep.subr.mxu0 0.0
    %162 = vmatpush1.xpose.msra.mxu0 %v128
    %163 = vmatprep.subr.mxu0 0.0
    %164 = vmatpush1.xpose.msra.mxu0 %v131
    %165 = vmatprep.subr.mxu0 0.0
    %166 = vmatpush1.xpose.msra.mxu0 0.0
    %167 = vmatprep.subr.mxu0 0.0
    %168 = vmatpush1.xpose.msra.mxu0 0.0
    %169 = vmatprep.subr.mxu0 0.0
    %170 = vmatpush1.xpose.msra.mxu0 0.0
    %171 = vmatprep.subr.mxu0 0.0
    %172 = vmatpush1.xpose.msra.mxu0 0.0
    %173 = vmatprep.subr.mxu0 0.0
    %174 = vmatpush1.xpose.msra.mxu0 0.0
    %175 = vmatprep.subr.mxu0 0.0
    %176 = vmatpush1.xpose.msra.mxu0 0.0
    %177 = vmatprep.subr.mxu0 0.0
    %178 = vmatpush1.xpose.msra.mxu0 0.0
    %179 = vmatprep.subr.mxu0 0.0
    %180 = vmatpush1.xpose.msra.mxu0 0.0
    %181 = vmatprep.subr.mxu0 0.0
    %182 = vmatpush1.xpose.msra.mxu0 0.0
    %183 = vmatprep.subr.mxu0 0.0
    %184 = vmatpush1.xpose.msra.mxu0 0.0
    %185 = vmatprep.subr.mxu0 0.0
    %186 = vmatpush1.xpose.msra.mxu0 0.0
    %187 = vmatprep.subr.mxu0 0.0
    %188 = vmatpush1.xpose.msra.mxu0 0.0
    %189 = vmatprep.subr.mxu0 0.0
    %190 = vmatpush1.xpose.msra.mxu0 0.0
    %191 = vmatprep.subr.mxu0 0.0
    %192 = vmatpush1.xpose.msra.mxu0 0.0
    %193 = vmatprep.subr.mxu0 0.0
    %194 = vmatpush1.xpose.msra.mxu0 0.0
    %195 = vmatprep.subr.mxu0 0.0
    %196 = vmatpush1.xpose.msra.mxu0 0.0
    %197 = vmatprep.mubr.f32.mxu0 0.0
    %198 = vmatmul.mubr.f32.gmra.mrb[0].mxu0 %v74
    %v199 = vpop.f32.mrb[0].mxu0
    %v200 = vadd.f32 %v55, %v199
    %v201 = vpop.f32.mrb[0].mxu0
    %202 = vmatprep.mubr.f32.mxu0 0.0
    %203 = vmatmul.mubr.f32.gmra.mrb[0].mxu0 %v77
    %v204 = vpop.f32.mrb[0].mxu0
    %v205 = vadd.f32 %v60, %v204
    %v206 = vpop.f32.mrb[0].mxu0
    %207 = vmatprep.mubr.f32.mxu0 0.0
    %208 = vmatmul.mubr.f32.gmra.mrb[0].mxu0 %v80
    %v209 = vpop.f32.mrb[0].mxu0
    %v210 = vadd.f32 %v65, %v209
    %v211 = vpop.f32.mrb[0].mxu0
    %212 = vmatprep.mubr.f32.mxu0 0.0
    %213 = vmatmul.mubr.f32.gmra.mrb[0].mxu0 %v83
    %v214 = vpop.f32.mrb[0].mxu0
    %v215 = vadd.f32 %v70, %v214
    %v216 = vpop.f32.mrb[0].mxu0
    %217 = vdwg.mxu0
    %v218 = vmax.f32 %v200, 0.0
    %v219 = vmax.f32 %v205, 0.0
    %v220 = vmax.f32 %v210, 0.0
    %v221 = vmax.f32 %v215, 0.0
    %v222 = vld [vmem:[%s3] sm:$0xff]
    %v223 = vld [vmem:[%s3 + $0x8] sm:$0xff]
    %v224 = vld [vmem:[%s3 + $0x10] sm:$0xff]
    %v225 = vld [vmem:[%s3 + $0x18] sm:$0xff]
    %v226 = vld [vmem:[%s4] sm:$0xff]
    %v227 = vld [vmem:[%s4 + $0x8] sm:$0xff]
    %v228 = vld [vmem:[%s4 + $0x10] sm:$0xff]
    %v229 = vld [vmem:[%s4 + $0x18] sm:$0xff]
    %231 = vset.pattern.permute.xlu0 0
    %232 = vperm.xlu0 %231, %v226
    %v233 = vpop.permute.xlu0 %232
    %236 = vset.pattern.permute.xlu0 0
    %237 = vperm.xlu0 %236, %v227
    %v238 = vpop.permute.xlu0 %237
    %241 = vset.pattern.permute.xlu0 0
    %242 = vperm.xlu0 %241, %v228
    %v243 = vpop.permute.xlu0 %242
    %246 = vset.pattern.permute.xlu0 0
    %247 = vperm.xlu0 %246, %v229
    %v248 = vpop.permute.xlu0 %247
    %vm250 = vcmask 261120
    %v252 = vsel %vm250, %v222, 0
    %v255 = vsel %vm250, %v223, 0
    %v258 = vsel %vm250, %v224, 0
    %v261 = vsel %vm250, %v225, 0
    %263 = vmatprep.subr.mxu0 0.0
    %264 = vmatpush1.msra.mxu0 %v218
    %265 = vmatprep.subr.mxu0 0.0
    %266 = vmatpush1.msra.mxu0 %v219
    %267 = vmatprep.subr.mxu0 0.0
    %268 = vmatpush1.msra.mxu0 %v220
    %269 = vmatprep.subr.mxu0 0.0
    %270 = vmatpush1.msra.mxu0 %v221
    %271 = vmatprep.subr.mxu0 0.0
    %272 = vmatpush1.msra.mxu0 0.0
    %273 = vmatprep.subr.mxu0 0.0
    %274 = vmatpush1.msra.mxu0 0.0
    %275 = vmatprep.subr.mxu0 0.0
    %276 = vmatpush1.msra.mxu0 0.0
    %277 = vmatprep.subr.mxu0 0.0
    %278 = vmatpush1.msra.mxu0 0.0
    %279 = vmatprep.subr.mxu0 0.0
    %280 = vmatpush1.msra.mxu0 0.0
    %281 = vmatprep.subr.mxu0 0.0
    %282 = vmatpush1.msra.mxu0 0.0
    %283 = vmatprep.subr.mxu0 0.0
    %284 = vmatpush1.msra.mxu0 0.0
    %285 = vmatprep.subr.mxu0 0.0
    %286 = vmatpush1.msra.mxu0 0.0
    %287 = vmatprep.subr.mxu0 0.0
    %288 = vmatpush1.msra.mxu0 0.0
    %289 = vmatprep.subr.mxu0 0.0
    %290 = vmatpush1.msra.mxu0 0.0
    %291 = vmatprep.subr.mxu0 0.0
    %292 = vmatpush1.msra.mxu0 0.0
    %293 = vmatprep.subr.mxu0 0.0
    %294 = vmatpush1.msra.mxu0 0.0
    %295 = vmatprep.subr.mxu0 0.0
    %296 = vmatpush1.msra.mxu0 0.0
    %297 = vmatprep.subr.mxu0 0.0
    %298 = vmatpush1.msra.mxu0 0.0
    %299 = vmatprep.subr.mxu0 0.0
    %300 = vmatpush1.msra.mxu0 0.0
    %301 = vmatprep.subr.mxu0 0.0
    %302 = vmatpush1.msra.mxu0 0.0
    %303 = vmatprep.subr.mxu0 0.0
    %304 = vmatpush1.msra.mxu0 0.0
    %305 = vmatprep.subr.mxu0 0.0
    %306 = vmatpush1.msra.mxu0 0.0
    %307 = vmatprep.subr.mxu0 0.0
    %308 = vmatpush1.msra.mxu0 0.0
    %309 = vmatprep.subr.mxu0 0.0
    %310 = vmatpush1.msra.mxu0 0.0
    %311 = vmatprep.subr.mxu0 0.0
    %312 = vmatpush1.msra.mxu0 0.0
    %313 = vmatprep.subr.mxu0 0.0
    %314 = vmatpush1.msra.mxu0 0.0
    %315 = vmatprep.subr.mxu0 0.0
    %316 = vmatpush1.msra.mxu0 0.0
    %317 = vmatprep.subr.mxu0 0.0
    %318 = vmatpush1.msra.mxu0 0.0
    %319 = vmatprep.subr.mxu0 0.0
    %320 = vmatpush1.msra.mxu0 0.0
    %321 = vmatprep.subr.mxu0 0.0
    %322 = vmatpush1.msra.mxu0 0.0
    %323 = vmatprep.subr.mxu0 0.0
    %324 = vmatpush1.msra.mxu0 0.0
    %325 = vmatprep.subr.mxu0 0.0
    %326 = vmatpush1.msra.mxu0 0.0
    %327 = vmatprep.mubr.f32.mxu0 0.0
    %328 = vmatmul.mubr.f32.gmra.mrb[0].mxu0 %v252
    %v329 = vpop.f32.mrb[0].mxu0
    %v330 = vadd.f32 %v233, %v329
    %v331 = vpop.f32.mrb[0].mxu0
    %332 = vmatprep.mubr.f32.mxu0 0.0
    %333 = vmatmul.mubr.f32.gmra.mrb[0].mxu0 %v255
    %v334 = vpop.f32.mrb[0].mxu0
    %v335 = vadd.f32 %v238, %v334
    %v336 = vpop.f32.mrb[0].mxu0
    %337 = vmatprep.mubr.f32.mxu0 0.0
    %338 = vmatmul.mubr.f32.gmra.mrb[0].mxu0 %v258
    %v339 = vpop.f32.mrb[0].mxu0
    %v340 = vadd.f32 %v243, %v339
    %v341 = vpop.f32.mrb[0].mxu0
    %342 = vmatprep.mubr.f32.mxu0 0.0
    %343 = vmatmul.mubr.f32.gmra.mrb[0].mxu0 %v261
    %v344 = vpop.f32.mrb[0].mxu0
    %v345 = vadd.f32 %v248, %v344
    %v346 = vpop.f32.mrb[0].mxu0
    %347 = vdwg.mxu0
    %v348 = vmax.f32 %v330, 0.0
    %v349 = vmax.f32 %v335, 0.0
    %v350 = vmax.f32 %v340, 0.0
    %v351 = vmax.f32 %v345, 0.0
    %v352 = vld [vmem:[%s5] sm:$0xff]
    %v353 = vld [vmem:[%s5 + $0x8] sm:$0xff]
    %v354 = vld [vmem:[%s5 + $0x10] sm:$0xff]
    %v355 = vld [vmem:[%s5 + $0x18] sm:$0xff]
    %357 = vset.pattern.permute.xlu0 0
    %358 = vperm.xlu0 %357, %v352
    %v359 = vpop.permute.xlu0 %358
    %362 = vset.pattern.permute.xlu0 0
    %363 = vperm.xlu0 %362, %v353
    %v364 = vpop.permute.xlu0 %363
    %367 = vset.pattern.permute.xlu0 0
    %368 = vperm.xlu0 %367, %v354
    %v369 = vpop.permute.xlu0 %368
    %372 = vset.pattern.permute.xlu0 0
    %373 = vperm.xlu0 %372, %v355
    %v374 = vpop.permute.xlu0 %373
    %v376 = vmul.f32 %v348, %v359
    %v377 = vmul.f32 %v349, %v364
    %v378 = vmul.f32 %v350, %v369
    %v379 = vmul.f32 %v351, %v374
    %v380 = vadd.f32 %v376, %v377
    %v381 = vadd.f32 %v380, %v378
    %v382 = vadd.f32 %v381, %v379
    %v383 = vrot.slane %v382, 4
    %v384 = vadd.f32 %v382, %v383
    %v385 = vrot.slane %v384, 2
    %v386 = vadd.f32 %v384, %v385
    %v387 = vrot.slane %v386, 1
    %v388 = vadd.f32 %v386, %v387
    %s389 = sld [smem:[#allocation2]]
    %v390 = vstv %s389
    %v391 = vadd.f32 %v388, %v390
    %392 = vst [vmem:[#allocation3] sm:$0x1] %v391
    // Predicated region
    $region30: #{tpu_custom_call.1} parent=1 // pred_check
      _
    $region31: #{tpu_custom_call.1} parent=1 // pred_check_branch
      %394 = sbr.rel (0) target = $region33
    $region32: #{tpu_custom_call.1} parent=1 // pred_region
      %s396 = ssub.s32 16, 16
      %397 = vsyncadd [#allocation4], %s396
      %s399 = sshll.u32 [#allocation3], 4
      %s400 = int_to_ptr.vmem [resolvable:$true] %s399
      %402 = dma.vmem_to_hbm [thread:$0]  %s400, 16, %s7, [#allocation4]
    $region33: #{tpu_custom_call.1} parent=1 // pred_fallthru
      _
    // Predicated region
    $region34: #{tpu_custom_call.1} parent=1 // pred_check
      _
    $region35: #{tpu_custom_call.1} parent=1 // pred_check_branch
      %404 = sbr.rel (0) target = $region37
    $region36: #{tpu_custom_call.1} parent=1 // pred_region
      %405 = dma.done [#allocation4], 16
    $region37: #{tpu_custom_call.1} parent=1 // pred_fallthru
      _
    %406 = vsyncpa [#allocation4], 1

</llo_original>
